<compile_context>
chip_gen: v7x
topology: tpu7x:2x2x1
jax: 0.10.0
libtpu: 0.0.40
codegen_flags: <defaults>
</compile_context>

<pallas_src>
import functools

import jax
import jax.numpy as jnp
from jax.experimental import pallas as pl
from jax.experimental.pallas import tpu as pltpu


def channel_attention_kernel(x_ref, w1t_ref, b1_ref, w2t_ref, b2_ref, o_ref,
                             *, hw_valid):
    """One batch block.

    x_ref  : (Bblk, C, HWp)   input, channels on sublanes, spatial on lanes
    w1t_ref: (C, Hid)         fc[0].weight, pre-transposed
    b1_ref : (1, Hid)         fc[0].bias
    w2t_ref: (Hid, C)         fc[2].weight, pre-transposed
    b2_ref : (1, C)           fc[2].bias
    o_ref  : (Bblk, C, HWp)   output
    """
    x = x_ref[...]                                   # keep native dtype (no f32 tile copy)
    bblk, _, hwp = x.shape

    # --- Global pooling over the spatial (lane) axis --------------------------
    # Sum accumulates in f32; zero pad lanes don't bias the sum but must be
    # masked to -inf for the max.
    avg = jnp.sum(x, axis=2, dtype=jnp.float32) * (1.0 / hw_valid)      # (Bblk, C)
    if hwp != hw_valid:
        lane = jax.lax.broadcasted_iota(jnp.int32, x.shape, 2)
        x_for_max = jnp.where(lane < hw_valid, x, -jnp.inf)
    else:
        x_for_max = x
    mx = jnp.max(x_for_max, axis=2).astype(jnp.float32)                 # (Bblk, C)

    # --- Shared MLP: one matmul pair for both branches and the whole block ----
    pooled = jnp.concatenate([avg, mx], axis=0)                          # (2*Bblk, C)
    w1t = w1t_ref[...].astype(jnp.float32)                               # (C, Hid)
    b1 = b1_ref[...].astype(jnp.float32)                                 # (1, Hid)
    w2t = w2t_ref[...].astype(jnp.float32)                               # (Hid, C)
    b2 = b2_ref[...].astype(jnp.float32)                                 # (1, C)

    h = jnp.maximum(
        jnp.dot(pooled, w1t, preferred_element_type=jnp.float32) + b1, 0.0)   # (2*Bblk, Hid)
    y = jnp.dot(h, w2t, preferred_element_type=jnp.float32) + b2              # (2*Bblk, C)
    attn = jax.nn.sigmoid(y[:bblk] + y[bblk:])                                # (Bblk, C)

    # --- Gate: per-channel scale broadcast over the lane (spatial) axis -------
    o_ref[...] = (x * attn[:, :, None].astype(x.dtype)).astype(o_ref.dtype)


def channel_attention_forward(x_nchw, params, *, vmem_budget_bytes=12 * 1024 * 1024):
    """params = (w1, b1, w2, b2) in PyTorch shapes:
       w1: (C//r, C), b1: (C//r,), w2: (C, C//r), b2: (C,)."""
    w1, b1, w2, b2 = params
    B, C, H, W = x_nchw.shape
    hidden = w1.shape[0]
    HW = H * W
    HWp = ((HW + 127) // 128) * 128                  # lane-dense (unmasked vst) output

    x = x_nchw.reshape(B, C, HW)
    if HWp != HW:
        x = jnp.pad(x, ((0, 0), (0, 0), (0, HWp - HW)))   # zero pad; masked in-kernel for max

    itemsize = jnp.dtype(x_nchw.dtype).itemsize
    slab = C * HWp * itemsize                        # bytes per batch element in VMEM
    # 2x input + 2x output double buffering => ~4x block bytes of scoped VMEM.
    bblk = max(1, min(B, vmem_budget_bytes // (4 * slab)))
    while B % bblk:                                  # keep the grid exact (no ragged tail)
        bblk -= 1
    grid = (B // bblk,)
    # TODO(synk): for very large H*W where even a single (C, HWp) slab exceeds the
    # VMEM budget, add a two-pass path (pool into a (C,1) scratch, then gate pass).

    w1t = jnp.asarray(w1).T                          # (C, hidden): no in-kernel transpose
    w2t = jnp.asarray(w2).T                          # (hidden, C)
    b1r = jnp.asarray(b1).reshape(1, hidden)
    b2r = jnp.asarray(b2).reshape(1, C)

    cost = pl.CostEstimate(
        flops=3 * B * C * HW + 8 * B * C * hidden,
        transcendentals=B * C,
        bytes_accessed=2 * B * C * HWp * itemsize + 2 * C * hidden * itemsize,
    )

    kern = functools.partial(channel_attention_kernel, hw_valid=HW)

    out = pl.pallas_call(
        kern,
        out_shape=jax.ShapeDtypeStruct((B, C, HWp), x_nchw.dtype),
        grid=grid,
        in_specs=[
            pl.BlockSpec((bblk, C, HWp), lambda b: (b, 0, 0)),   # x: one batch block
            pl.BlockSpec((C, hidden), lambda b: (0, 0)),         # w1^T (grid-invariant)
            pl.BlockSpec((1, hidden), lambda b: (0, 0)),         # b1
            pl.BlockSpec((hidden, C), lambda b: (0, 0)),         # w2^T
            pl.BlockSpec((1, C), lambda b: (0, 0)),              # b2
        ],
        out_specs=pl.BlockSpec((bblk, C, HWp), lambda b: (b, 0, 0)),
        compiler_params=pltpu.CompilerParams(
            dimension_semantics=("parallel",)),                   # megacore split on v7x
        cost_estimate=cost,
    )(x, w1t, b1r, w2t, b2r)

    if HWp != HW:
        out = out[:, :, :HW]
    return out.reshape(B, C, H, W)


def channel_attention_ref(x, params):
    """Pure-JAX reference (same math as the PyTorch module)."""
    w1, b1, w2, b2 = params
    avg = jnp.mean(x, axis=(2, 3))                   # (B, C)
    mx = jnp.max(x, axis=(2, 3))                     # (B, C)

    def fc(v):
        h = jnp.maximum(v @ w1.T + b1, 0.0)
        return h @ w2.T + b2

    attn = jax.nn.sigmoid(fc(avg) + fc(mx))          # (B, C)
    return x * attn[:, :, None, None]


if __name__ == "__main__":
    # channels must satisfy channels // reduction >= 1 (module default r=16),
    # so use C=64 (hidden=4) at small spatial/batch sizes.
    B, C = 2, 64
    reduction = 16
    hidden = C // reduction

    key = jax.random.PRNGKey(0)
    ks = jax.random.split(key, 5)

    # Deterministic synthetic parameters (shapes match nn.Linear layout).
    w1 = jax.random.normal(ks[1], (hidden, C), jnp.float32) * 0.1
    b1 = jax.random.normal(ks[2], (hidden,), jnp.float32) * 0.1
    w2 = jax.random.normal(ks[3], (C, hidden), jnp.float32) * 0.1
    b2 = jax.random.normal(ks[4], (C,), jnp.float32) * 0.1
    params = (w1, b1, w2, b2)

    # Case 1: H*W already a multiple of 128 (no padding path).
    x1 = jax.random.normal(ks[0], (B, C, 16, 16), jnp.float32)
    out1 = jax.block_until_ready(channel_attention_forward(x1, params))
    ref1 = channel_attention_ref(x1, params)
    assert out1.shape == x1.shape
    assert jnp.allclose(out1, ref1, atol=1e-5, rtol=1e-5), float(
        jnp.max(jnp.abs(out1 - ref1)))

    # Case 2: H*W not a multiple of 128 (exercises the masked pooling / padding).
    x2 = jax.random.normal(ks[0], (B, C, 7, 7), jnp.float32)
    out2 = jax.block_until_ready(channel_attention_forward(x2, params))
    ref2 = channel_attention_ref(x2, params)
    assert out2.shape == x2.shape
    assert jnp.allclose(out2, ref2, atol=1e-5, rtol=1e-5), float(
        jnp.max(jnp.abs(out2 - ref2)))

    print("KERNEL_OK")
</pallas_src>

<mosaic_0001>
module attributes {stable_mosaic.version = 11 : i64} {
  func.func @channel_attention_kernel(%arg0: i32, %arg1: memref<2x64x256xf32, #tpu.memory_space<vmem>>, %arg2: memref<64x4xf32, #tpu.memory_space<vmem>>, %arg3: memref<1x4xf32, #tpu.memory_space<vmem>>, %arg4: memref<4x64xf32, #tpu.memory_space<vmem>>, %arg5: memref<1x64xf32, #tpu.memory_space<vmem>>, %arg6: memref<2x64x256xf32, #tpu.memory_space<vmem>>) attributes {dimension_semantics = [#tpu.dimension_semantics<parallel>], iteration_bounds = array<i64: 1>, scalar_prefetch = 0 : i64, scratch_operands = 0 : i64, tpu.core_type = #tpu.core_type<tc>, window_params = [{transform_indices = @transform_0, window_bounds = array<i64: 2, 64, 256>}, {pipeline_mode = #tpu.pipeline_mode<synchronous>, transform_indices = @transform_1, window_bounds = array<i64: 64, 4>}, {pipeline_mode = #tpu.pipeline_mode<synchronous>, transform_indices = @transform_2, window_bounds = array<i64: 1, 4>}, {pipeline_mode = #tpu.pipeline_mode<synchronous>, transform_indices = @transform_3, window_bounds = array<i64: 4, 64>}, {pipeline_mode = #tpu.pipeline_mode<synchronous>, transform_indices = @transform_4, window_bounds = array<i64: 1, 64>}, {transform_indices = @transform_5, window_bounds = array<i64: 2, 64, 256>}]} {
    %c0 = arith.constant 0 : index
    %c0_0 = arith.constant 0 : index
    %c0_1 = arith.constant 0 : index
    %0 = vector.load %arg1[%c0, %c0_0, %c0_1] : memref<2x64x256xf32, #tpu.memory_space<vmem>>, vector<2x64x256xf32>
    %cst = arith.constant dense<0.000000e+00> : vector<2x64xf32>
    %1 = vector.multi_reduction <add>, %0, %cst [2] : vector<2x64x256xf32> to vector<2x64xf32>
    %cst_2 = arith.constant 3.906250e-03 : f32
    %2 = vector.broadcast %cst_2 : f32 to vector<2x64xf32>
    %3 = arith.mulf %1, %2 : vector<2x64xf32>
    %cst_3 = arith.constant dense<0xFF800000> : vector<2x64xf32>
    %4 = vector.multi_reduction <maximumf>, %0, %cst_3 [2] : vector<2x64x256xf32> to vector<2x64xf32>
    %5 = tpu.concatenate %3, %4 in 0 : vector<2x64xf32>, vector<2x64xf32> -> vector<4x64xf32>
    %c0_4 = arith.constant 0 : index
    %c0_5 = arith.constant 0 : index
    %6 = vector.load %arg2[%c0_4, %c0_5] : memref<64x4xf32, #tpu.memory_space<vmem>>, vector<64x4xf32>
    %c0_6 = arith.constant 0 : index
    %c0_7 = arith.constant 0 : index
    %7 = vector.load %arg3[%c0_6, %c0_7] : memref<1x4xf32, #tpu.memory_space<vmem>>, vector<1x4xf32>
    %c0_8 = arith.constant 0 : index
    %c0_9 = arith.constant 0 : index
    %8 = vector.load %arg4[%c0_8, %c0_9] : memref<4x64xf32, #tpu.memory_space<vmem>>, vector<4x64xf32>
    %c0_10 = arith.constant 0 : index
    %c0_11 = arith.constant 0 : index
    %9 = vector.load %arg5[%c0_10, %c0_11] : memref<1x64xf32, #tpu.memory_space<vmem>>, vector<1x64xf32>
    %cst_12 = arith.constant dense<0.000000e+00> : vector<4x4xf32>
    %10 = tpu.matmul %5, %6, %cst_12 {dimension_numbers = #tpu.dot_dimension_numbers<[1], [0], [0], [1], [0, 0, 1, 1], [], []>} : vector<4x64xf32>, vector<64x4xf32>, vector<4x4xf32> -> vector<4x4xf32>
    %11 = vector.broadcast %7 : vector<1x4xf32> to vector<4x4xf32>
    %12 = arith.addf %10, %11 : vector<4x4xf32>
    %cst_13 = arith.constant 0.000000e+00 : f32
    %13 = vector.broadcast %cst_13 : f32 to vector<4x4xf32>
    %14 = arith.maximumf %12, %13 : vector<4x4xf32>
    %cst_14 = arith.constant dense<0.000000e+00> : vector<4x64xf32>
    %15 = tpu.matmul %14, %8, %cst_14 {dimension_numbers = #tpu.dot_dimension_numbers<[1], [0], [0], [1], [0, 0, 1, 1], [], []>} : vector<4x4xf32>, vector<4x64xf32>, vector<4x64xf32> -> vector<4x64xf32>
    %16 = vector.broadcast %9 : vector<1x64xf32> to vector<4x64xf32>
    %17 = arith.addf %15, %16 : vector<4x64xf32>
    %18 = vector.extract_strided_slice %17 {offsets = [0, 0], sizes = [2, 64], strides = [1, 1]} : vector<4x64xf32> to vector<2x64xf32>
    %19 = vector.extract_strided_slice %17 {offsets = [2, 0], sizes = [2, 64], strides = [1, 1]} : vector<4x64xf32> to vector<2x64xf32>
    %20 = arith.addf %18, %19 : vector<2x64xf32>
    %21 = arith.negf %20 : vector<2x64xf32>
    %22 = math.exp %21 : vector<2x64xf32>
    %cst_15 = arith.constant 1.000000e+00 : f32
    %23 = vector.broadcast %cst_15 : f32 to vector<2x64xf32>
    %24 = arith.addf %23, %22 : vector<2x64xf32>
    %25 = arith.divf %23, %24 : vector<2x64xf32>
    %26 = vector.shape_cast %25 : vector<2x64xf32> to vector<2x64x1xf32>
    %27 = vector.broadcast %26 : vector<2x64x1xf32> to vector<2x64x256xf32>
    %28 = arith.mulf %0, %27 : vector<2x64x256xf32>
    %c0_16 = arith.constant 0 : index
    %c0_17 = arith.constant 0 : index
    %c0_18 = arith.constant 0 : index
    %29 = vector.load %arg6[%c0_16, %c0_17, %c0_18] : memref<2x64x256xf32, #tpu.memory_space<vmem>>, vector<2x64x256xf32>
    tpu.vector_store %arg6[%c0_16, %c0_17, %c0_18], %28 {strides = array<i32>} : memref<2x64x256xf32, #tpu.memory_space<vmem>>, vector<2x64x256xf32>,
    return
  }
  func.func @transform_0(%arg0: i32) -> (i32, i32, i32) {
    %c0_i32 = arith.constant 0 : i32
    %c0_i32_0 = arith.constant 0 : i32
    %c0_i32_1 = arith.constant 0 : i32
    return %arg0, %c0_i32, %c0_i32_0 : i32, i32, i32
  }
  func.func @transform_1(%arg0: i32) -> (i32, i32) {
    %c0_i32 = arith.constant 0 : i32
    %c0_i32_0 = arith.constant 0 : i32
    %c0_i32_1 = arith.constant 0 : i32
    return %c0_i32, %c0_i32_0 : i32, i32
  }
  func.func @transform_2(%arg0: i32) -> (i32, i32) {
    %c0_i32 = arith.constant 0 : i32
    %c0_i32_0 = arith.constant 0 : i32
    %c0_i32_1 = arith.constant 0 : i32
    return %c0_i32, %c0_i32_0 : i32, i32
  }
  func.func @transform_3(%arg0: i32) -> (i32, i32) {
    %c0_i32 = arith.constant 0 : i32
    %c0_i32_0 = arith.constant 0 : i32
    %c0_i32_1 = arith.constant 0 : i32
    return %c0_i32, %c0_i32_0 : i32, i32
  }
  func.func @transform_4(%arg0: i32) -> (i32, i32) {
    %c0_i32 = arith.constant 0 : i32
    %c0_i32_0 = arith.constant 0 : i32
    %c0_i32_1 = arith.constant 0 : i32
    return %c0_i32, %c0_i32_0 : i32, i32
  }
  func.func @transform_5(%arg0: i32) -> (i32, i32, i32) {
    %c0_i32 = arith.constant 0 : i32
    %c0_i32_0 = arith.constant 0 : i32
    %c0_i32_1 = arith.constant 0 : i32
    return %arg0, %c0_i32, %c0_i32_0 : i32, i32, i32
  }
}

</mosaic_0001>

<llo_original>
// kernel: tpu_custom_call.1
$region0: #{tpu_custom_call.1}
  #allocation0 [shape = 'u32[]', space=smem, size = 0x4, offset = 0x4, fixed_abs, tag = 'smem constant byte address 0x4 - core index']
  #allocation1 [shape = 'u32[144,128]{1,0:T(1,128)}', space=vmem, size = 0x12000, scoped, tag = 'internal scratch']
  %s0 = inlined_call_operand.hbm [shape: f32[2,64,256], index: 0, kind: input, shape index: {}]
  %s1 = inlined_call_operand.vmem [shape: f32[64,4], index: 1, kind: input, shape index: {}]
  %s2 = inlined_call_operand.vmem [shape: f32[1,4], index: 2, kind: input, shape index: {}]
  %s3 = inlined_call_operand.vmem [shape: f32[4,64], index: 3, kind: input, shape index: {}]
  %s4 = inlined_call_operand.vmem [shape: f32[1,64], index: 4, kind: input, shape index: {}]
  %s5 = inlined_call_operand.hbm [shape: f32[2,64,256], index: 5, kind: output, shape index: {}]
  %s6 = sld [smem:[#allocation0]]
  $region34: #{tpu_custom_call.1} parent=0
    _
  %s8 = ssub.s32 1, %s6
  %s9 = scalar_select 0, %s8, %s6
  $region1: #{tpu_custom_call.1} parent=0
    #allocation2 [shape = 'u8[131072]{0}', space=vmem, size = 0x20000, scoped, tag = 'input window, operand 0, single buffered']
    #allocation3 [shape = 's32[1]{0}', space=sflag, size = 0x4, scoped, tag = 'scoped memory for tpu_custom_call.1']
    #allocation4 [shape = 's32[1]{0}', space=sflag, size = 0x4, scoped, tag = 'scoped memory for tpu_custom_call.1']
    #allocation5 [shape = 'u8[131072]{0}', space=vmem, size = 0x20000, scoped, tag = 'output window, operand 0, single buffered']
    %10 = vsyncpa [#allocation3], 0
    %11 = vsyncpa [#allocation4], 0
    // Predicated region
    $region2: #{tpu_custom_call.1} parent=1 // pred_check
      _
    $region3: #{tpu_custom_call.1} parent=1 // pred_check_branch
      %13 = sbr.rel (0) target = $region5
    $region4: #{tpu_custom_call.1} parent=1 // pred_region
      %s15 = ssub.s32 4096, 4096
      %16 = vsyncadd [#allocation3], %s15
      %s17 = sshll.u32 [#allocation2], 4
      %s18 = int_to_ptr.vmem [resolvable:$true] %s17
      %23 = dma.hbm_to_vmem [thread:$0]  %s0, 4096, %s18, [#allocation3], 256, 256, 16
    $region5: #{tpu_custom_call.1} parent=1 // pred_fallthru
      _
    // Predicated region
    $region6: #{tpu_custom_call.1} parent=1 // pred_check
      _
    $region7: #{tpu_custom_call.1} parent=1 // pred_check_branch
      %25 = sbr.rel (0) target = $region9
    $region8: #{tpu_custom_call.1} parent=1 // pred_region
      _
    $region9: #{tpu_custom_call.1} parent=1 // pred_fallthru
      _
    // Predicated region
    $region10: #{tpu_custom_call.1} parent=1 // pred_check
      _
    $region11: #{tpu_custom_call.1} parent=1 // pred_check_branch
      %27 = sbr.rel (0) target = $region13
    $region12: #{tpu_custom_call.1} parent=1 // pred_region
      _
    $region13: #{tpu_custom_call.1} parent=1 // pred_fallthru
      _
    // Predicated region
    $region14: #{tpu_custom_call.1} parent=1 // pred_check
      _
    $region15: #{tpu_custom_call.1} parent=1 // pred_check_branch
      %29 = sbr.rel (0) target = $region17
    $region16: #{tpu_custom_call.1} parent=1 // pred_region
      _
    $region17: #{tpu_custom_call.1} parent=1 // pred_fallthru
      _
    // Predicated region
    $region18: #{tpu_custom_call.1} parent=1 // pred_check
      _
    $region19: #{tpu_custom_call.1} parent=1 // pred_check_branch
      %31 = sbr.rel (0) target = $region21
    $region20: #{tpu_custom_call.1} parent=1 // pred_region
      _
    $region21: #{tpu_custom_call.1} parent=1 // pred_fallthru
      _
    // Predicated region
    $region22: #{tpu_custom_call.1} parent=1 // pred_check
      _
    $region23: #{tpu_custom_call.1} parent=1 // pred_check_branch
      %33 = sbr.rel (0) target = $region25
    $region24: #{tpu_custom_call.1} parent=1 // pred_region
      %34 = dma.done [#allocation3], 4096
    $region25: #{tpu_custom_call.1} parent=1 // pred_fallthru
      _
    %v35 = vld [vmem:[#allocation2] sm:$0xff]
    %v36 = vld [vmem:[#allocation2 + $0x8] sm:$0xff]
    %v37 = vld [vmem:[#allocation2 + $0x10] sm:$0xff]
    %v38 = vld [vmem:[#allocation2 + $0x18] sm:$0xff]
    %v39 = vld [vmem:[#allocation2 + $0x20] sm:$0xff]
    %v40 = vld [vmem:[#allocation2 + $0x28] sm:$0xff]
    %v41 = vld [vmem:[#allocation2 + $0x30] sm:$0xff]
    %v42 = vld [vmem:[#allocation2 + $0x38] sm:$0xff]
    %v43 = vld [vmem:[#allocation2 + $0x40] sm:$0xff]
    %v44 = vld [vmem:[#allocation2 + $0x48] sm:$0xff]
    %v45 = vld [vmem:[#allocation2 + $0x50] sm:$0xff]
    %v46 = vld [vmem:[#allocation2 + $0x58] sm:$0xff]
    %v47 = vld [vmem:[#allocation2 + $0x60] sm:$0xff]
    %v48 = vld [vmem:[#allocation2 + $0x68] sm:$0xff]
    %v49 = vld [vmem:[#allocation2 + $0x70] sm:$0xff]
    %v50 = vld [vmem:[#allocation2 + $0x78] sm:$0xff]
    %v51 = vld [vmem:[#allocation2 + $0x80] sm:$0xff]
    %v52 = vld [vmem:[#allocation2 + $0x88] sm:$0xff]
    %v53 = vld [vmem:[#allocation2 + $0x90] sm:$0xff]
    %v54 = vld [vmem:[#allocation2 + $0x98] sm:$0xff]
    %v55 = vld [vmem:[#allocation2 + $0xa0] sm:$0xff]
    %v56 = vld [vmem:[#allocation2 + $0xa8] sm:$0xff]
    %v57 = vld [vmem:[#allocation2 + $0xb0] sm:$0xff]
    %v58 = vld [vmem:[#allocation2 + $0xb8] sm:$0xff]
    %v59 = vld [vmem:[#allocation2 + $0xc0] sm:$0xff]
    %v60 = vld [vmem:[#allocation2 + $0xc8] sm:$0xff]
    %v61 = vld [vmem:[#allocation2 + $0xd0] sm:$0xff]
    %v62 = vld [vmem:[#allocation2 + $0xd8] sm:$0xff]
    %v63 = vld [vmem:[#allocation2 + $0xe0] sm:$0xff]
    %v64 = vld [vmem:[#allocation2 + $0xe8] sm:$0xff]
    %v65 = vld [vmem:[#allocation2 + $0xf0] sm:$0xff]
    %v66 = vld [vmem:[#allocation2 + $0xf8] sm:$0xff]
    %v67 = vadd.f32 %v35, %v36
    %68 = vadd.xlane.f32.xlu0 %v67
    %v69 = vpop.xlane.xlu0 %68
    %v70 = vadd.f32 %v37, %v38
    %71 = vadd.xlane.f32.xlu0 %v70
    %v72 = vpop.xlane.xlu0 %71
    %v73 = vadd.f32 %v39, %v40
    %74 = vadd.xlane.f32.xlu0 %v73
    %v75 = vpop.xlane.xlu0 %74
    %v76 = vadd.f32 %v41, %v42
    %77 = vadd.xlane.f32.xlu0 %v76
    %v78 = vpop.xlane.xlu0 %77
    %v79 = vadd.f32 %v43, %v44
    %80 = vadd.xlane.f32.xlu0 %v79
    %v81 = vpop.xlane.xlu0 %80
    %v82 = vadd.f32 %v45, %v46
    %83 = vadd.xlane.f32.xlu0 %v82
    %v84 = vpop.xlane.xlu0 %83
    %v85 = vadd.f32 %v47, %v48
    %86 = vadd.xlane.f32.xlu0 %v85
    %v87 = vpop.xlane.xlu0 %86
    %v88 = vadd.f32 %v49, %v50
    %89 = vadd.xlane.f32.xlu0 %v88
    %v90 = vpop.xlane.xlu0 %89
    %v91 = vadd.f32 %v51, %v52
    %92 = vadd.xlane.f32.xlu0 %v91
    %v93 = vpop.xlane.xlu0 %92
    %v94 = vadd.f32 %v53, %v54
    %95 = vadd.xlane.f32.xlu0 %v94
    %v96 = vpop.xlane.xlu0 %95
    %v97 = vadd.f32 %v55, %v56
    %98 = vadd.xlane.f32.xlu0 %v97
    %v99 = vpop.xlane.xlu0 %98
    %v100 = vadd.f32 %v57, %v58
    %101 = vadd.xlane.f32.xlu0 %v100
    %v102 = vpop.xlane.xlu0 %101
    %v103 = vadd.f32 %v59, %v60
    %104 = vadd.xlane.f32.xlu0 %v103
    %v105 = vpop.xlane.xlu0 %104
    %v106 = vadd.f32 %v61, %v62
    %107 = vadd.xlane.f32.xlu0 %v106
    %v108 = vpop.xlane.xlu0 %107
    %v109 = vadd.f32 %v63, %v64
    %110 = vadd.xlane.f32.xlu0 %v109
    %v111 = vpop.xlane.xlu0 %110
    %v112 = vadd.f32 %v65, %v66
    %113 = vadd.xlane.f32.xlu0 %v112
    %v114 = vpop.xlane.xlu0 %113
    %v115 = vmul.f32 %v69, 0.00390625
    %v116 = vmul.f32 %v72, 0.00390625
    %v117 = vmul.f32 %v75, 0.00390625
    %v118 = vmul.f32 %v78, 0.00390625
    %v119 = vmul.f32 %v81, 0.00390625
    %v120 = vmul.f32 %v84, 0.00390625
    %v121 = vmul.f32 %v87, 0.00390625
    %v122 = vmul.f32 %v90, 0.00390625
    %v123 = vmul.f32 %v93, 0.00390625
    %v124 = vmul.f32 %v96, 0.00390625
    %v125 = vmul.f32 %v99, 0.00390625
    %v126 = vmul.f32 %v102, 0.00390625
    %v127 = vmul.f32 %v105, 0.00390625
    %v128 = vmul.f32 %v108, 0.00390625
    %v129 = vmul.f32 %v111, 0.00390625
    %v130 = vmul.f32 %v114, 0.00390625
    %v131 = vmax.f32 %v35, %v36
    %132 = vmax.xlane.f32.xlu0 %v131
    %v133 = vpop.xlane.xlu0 %132
    %v134 = vmax.f32 %v37, %v38
    %135 = vmax.xlane.f32.xlu0 %v134
    %v136 = vpop.xlane.xlu0 %135
    %v137 = vmax.f32 %v39, %v40
    %138 = vmax.xlane.f32.xlu0 %v137
    %v139 = vpop.xlane.xlu0 %138
    %v140 = vmax.f32 %v41, %v42
    %141 = vmax.xlane.f32.xlu0 %v140
    %v142 = vpop.xlane.xlu0 %141
    %v143 = vmax.f32 %v43, %v44
    %144 = vmax.xlane.f32.xlu0 %v143
    %v145 = vpop.xlane.xlu0 %144
    %v146 = vmax.f32 %v45, %v46
    %147 = vmax.xlane.f32.xlu0 %v146
    %v148 = vpop.xlane.xlu0 %147
    %v149 = vmax.f32 %v47, %v48
    %150 = vmax.xlane.f32.xlu0 %v149
    %v151 = vpop.xlane.xlu0 %150
    %v152 = vmax.f32 %v49, %v50
    %153 = vmax.xlane.f32.xlu0 %v152
    %v154 = vpop.xlane.xlu0 %153
    %v155 = vmax.f32 %v51, %v52
    %156 = vmax.xlane.f32.xlu0 %v155
    %v157 = vpop.xlane.xlu0 %156
    %v158 = vmax.f32 %v53, %v54
    %159 = vmax.xlane.f32.xlu0 %v158
    %v160 = vpop.xlane.xlu0 %159
    %v161 = vmax.f32 %v55, %v56
    %162 = vmax.xlane.f32.xlu0 %v161
    %v163 = vpop.xlane.xlu0 %162
    %v164 = vmax.f32 %v57, %v58
    %165 = vmax.xlane.f32.xlu0 %v164
    %v166 = vpop.xlane.xlu0 %165
    %v167 = vmax.f32 %v59, %v60
    %168 = vmax.xlane.f32.xlu0 %v167
    %v169 = vpop.xlane.xlu0 %168
    %v170 = vmax.f32 %v61, %v62
    %171 = vmax.xlane.f32.xlu0 %v170
    %v172 = vpop.xlane.xlu0 %171
    %v173 = vmax.f32 %v63, %v64
    %174 = vmax.xlane.f32.xlu0 %v173
    %v175 = vpop.xlane.xlu0 %174
    %v176 = vmax.f32 %v65, %v66
    %177 = vmax.xlane.f32.xlu0 %v176
    %v178 = vpop.xlane.xlu0 %177
    %v195 = vlaneseq
    %v196 = vand.u32 %v195, 127
    %v197 = vlaneseq
    %v198 = vshrl.u32 %v197, 7
    %v199 = vsub.s32 %v196, %v198
    %v200 = vrot.slane %v115, %v199
    %v201 = vadd.s32 %v196, 4294967288
    %v202 = vlaneseq
    %v203 = vshrl.u32 %v202, 7
    %v204 = vsub.s32 %v201, %v203
    %v205 = vrot.slane %v116, %v204
    %vm206 = vcmask 130112
    %v207 = vsel %vm206, %v205, %v200
    %v208 = vadd.s32 %v196, 4294967280
    %v209 = vlaneseq
    %v210 = vshrl.u32 %v209, 7
    %v211 = vsub.s32 %v208, %v210
    %v212 = vrot.slane %v117, %v211
    %vm213 = vcmask 195712
    %v214 = vsel %vm213, %v212, %v207
    %v215 = vadd.s32 %v196, 4294967272
    %v216 = vlaneseq
    %v217 = vshrl.u32 %v216, 7
    %v218 = vsub.s32 %v215, %v217
    %v219 = vrot.slane %v118, %v218
    %vm220 = vcmask 261312
    %v221 = vsel %vm220, %v219, %v214
    %v222 = vadd.s32 %v196, 4294967264
    %v223 = vlaneseq
    %v224 = vshrl.u32 %v223, 7
    %v225 = vsub.s32 %v222, %v224
    %v226 = vrot.slane %v119, %v225
    %vm227 = vcmask 326912
    %v228 = vsel %vm227, %v226, %v221
    %v229 = vadd.s32 %v196, 4294967256
    %v230 = vlaneseq
    %v231 = vshrl.u32 %v230, 7
    %v232 = vsub.s32 %v229, %v231
    %v233 = vrot.slane %v120, %v232
    %vm234 = vcmask 392512
    %v235 = vsel %vm234, %v233, %v228
    %v236 = vadd.s32 %v196, 4294967248
    %v237 = vlaneseq
    %v238 = vshrl.u32 %v237, 7
    %v239 = vsub.s32 %v236, %v238
    %v240 = vrot.slane %v121, %v239
    %vm241 = vcmask 458112
    %v242 = vsel %vm241, %v240, %v235
    %v243 = vadd.s32 %v196, 4294967240
    %v244 = vlaneseq
    %v245 = vshrl.u32 %v244, 7
    %v246 = vsub.s32 %v243, %v245
    %v247 = vrot.slane %v122, %v246
    %vm248 = vcmask 523712
    %v249 = vsel %vm248, %v247, %v242
    %v250 = vlaneseq
    %v251 = vshrl.u32 %v250, 7
    %v252 = vsub.s32 %v196, %v251
    %v253 = vrot.slane %v123, %v252
    %v254 = vlaneseq
    %v255 = vshrl.u32 %v254, 7
    %v256 = vsub.s32 %v201, %v255
    %v257 = vrot.slane %v124, %v256
    %v258 = vsel %vm206, %v257, %v253
    %v259 = vlaneseq
    %v260 = vshrl.u32 %v259, 7
    %v261 = vsub.s32 %v208, %v260
    %v262 = vrot.slane %v125, %v261
    %v263 = vsel %vm213, %v262, %v258
    %v264 = vlaneseq
    %v265 = vshrl.u32 %v264, 7
    %v266 = vsub.s32 %v215, %v265
    %v267 = vrot.slane %v126, %v266
    %v268 = vsel %vm220, %v267, %v263
    %v269 = vlaneseq
    %v270 = vshrl.u32 %v269, 7
    %v271 = vsub.s32 %v222, %v270
    %v272 = vrot.slane %v127, %v271
    %v273 = vsel %vm227, %v272, %v268
    %v274 = vlaneseq
    %v275 = vshrl.u32 %v274, 7
    %v276 = vsub.s32 %v229, %v275
    %v277 = vrot.slane %v128, %v276
    %v278 = vsel %vm234, %v277, %v273
    %v279 = vlaneseq
    %v280 = vshrl.u32 %v279, 7
    %v281 = vsub.s32 %v236, %v280
    %v282 = vrot.slane %v129, %v281
    %v283 = vsel %vm241, %v282, %v278
    %v284 = vlaneseq
    %v285 = vshrl.u32 %v284, 7
    %v286 = vsub.s32 %v243, %v285
    %v287 = vrot.slane %v130, %v286
    %v288 = vsel %vm248, %v287, %v283
    %vm289 = vcmask 1041409
    %v290 = vsel %vm289, %v288, %v249
    %v308 = vlaneseq
    %v309 = vshrl.u32 %v308, 7
    %v310 = vsub.s32 %v196, %v309
    %v311 = vrot.slane %v133, %v310
    %v312 = vlaneseq
    %v313 = vshrl.u32 %v312, 7
    %v314 = vsub.s32 %v201, %v313
    %v315 = vrot.slane %v136, %v314
    %v316 = vsel %vm206, %v315, %v311
    %v317 = vlaneseq
    %v318 = vshrl.u32 %v317, 7
    %v319 = vsub.s32 %v208, %v318
    %v320 = vrot.slane %v139, %v319
    %v321 = vsel %vm213, %v320, %v316
    %v322 = vlaneseq
    %v323 = vshrl.u32 %v322, 7
    %v324 = vsub.s32 %v215, %v323
    %v325 = vrot.slane %v142, %v324
    %v326 = vsel %vm220, %v325, %v321
    %v327 = vlaneseq
    %v328 = vshrl.u32 %v327, 7
    %v329 = vsub.s32 %v222, %v328
    %v330 = vrot.slane %v145, %v329
    %v331 = vsel %vm227, %v330, %v326
    %v332 = vlaneseq
    %v333 = vshrl.u32 %v332, 7
    %v334 = vsub.s32 %v229, %v333
    %v335 = vrot.slane %v148, %v334
    %v336 = vsel %vm234, %v335, %v331
    %v337 = vlaneseq
    %v338 = vshrl.u32 %v337, 7
    %v339 = vsub.s32 %v236, %v338
    %v340 = vrot.slane %v151, %v339
    %v341 = vsel %vm241, %v340, %v336
    %v342 = vlaneseq
    %v343 = vshrl.u32 %v342, 7
    %v344 = vsub.s32 %v243, %v343
    %v345 = vrot.slane %v154, %v344
    %v346 = vsel %vm248, %v345, %v341
    %v347 = vlaneseq
    %v348 = vshrl.u32 %v347, 7
    %v349 = vsub.s32 %v196, %v348
    %v350 = vrot.slane %v157, %v349
    %v351 = vlaneseq
    %v352 = vshrl.u32 %v351, 7
    %v353 = vsub.s32 %v201, %v352
    %v354 = vrot.slane %v160, %v353
    %v355 = vsel %vm206, %v354, %v350
    %v356 = vlaneseq
    %v357 = vshrl.u32 %v356, 7
    %v358 = vsub.s32 %v208, %v357
    %v359 = vrot.slane %v163, %v358
    %v360 = vsel %vm213, %v359, %v355
    %v361 = vlaneseq
    %v362 = vshrl.u32 %v361, 7
    %v363 = vsub.s32 %v215, %v362
    %v364 = vrot.slane %v166, %v363
    %v365 = vsel %vm220, %v364, %v360
    %v366 = vlaneseq
    %v367 = vshrl.u32 %v366, 7
    %v368 = vsub.s32 %v222, %v367
    %v369 = vrot.slane %v169, %v368
    %v370 = vsel %vm227, %v369, %v365
    %v371 = vlaneseq
    %v372 = vshrl.u32 %v371, 7
    %v373 = vsub.s32 %v229, %v372
    %v374 = vrot.slane %v172, %v373
    %v375 = vsel %vm234, %v374, %v370
    %v376 = vlaneseq
    %v377 = vshrl.u32 %v376, 7
    %v378 = vsub.s32 %v236, %v377
    %v379 = vrot.slane %v175, %v378
    %v380 = vsel %vm241, %v379, %v375
    %v381 = vlaneseq
    %v382 = vshrl.u32 %v381, 7
    %v383 = vsub.s32 %v243, %v382
    %v384 = vrot.slane %v178, %v383
    %v385 = vsel %vm248, %v384, %v380
    %vm386 = vcmask 1043459
    %v387 = vsel %vm386, %v385, %v346
    %vm389 = vcmask 1041408
    %v390 = vsel %vm389, %v290, %v387
    %v391 = vld [vmem:[%s1] sm:$0xff]
    %v392 = vld [vmem:[%s1 + $0x8] sm:$0xff]
    %v393 = vld [vmem:[%s1 + $0x10] sm:$0xff]
    %v394 = vld [vmem:[%s1 + $0x18] sm:$0xff]
    %v395 = vld [vmem:[%s1 + $0x20] sm:$0xff]
    %v396 = vld [vmem:[%s1 + $0x28] sm:$0xff]
    %v397 = vld [vmem:[%s1 + $0x30] sm:$0xff]
    %v398 = vld [vmem:[%s1 + $0x38] sm:$0xff]
    %v399 = vld [vmem:[%s2] sm:$0x1]
    %v400 = vld [vmem:[%s3] sm:$0xf]
    %v401 = vld [vmem:[%s4] sm:$0x1]
    %v403 = vlaneseq
    %v404 = vshrl.u32 %v403, 7
    %v405 = vsub.s32 0, %v404
    %v406 = vrot.slane %v399, %v405
    %vm408 = vcmask 523264
    %v410 = vsel %vm408, %v390, 0
    %412 = vmatprep.subr.mxu0 0.0
    %413 = vmatpush1.msra.mxu0 %v391
    %414 = vmatprep.subr.mxu0 0.0
    %415 = vmatpush1.msra.mxu0 %v392
    %416 = vmatprep.subr.mxu0 0.0
    %417 = vmatpush1.msra.mxu0 %v393
    %418 = vmatprep.subr.mxu0 0.0
    %419 = vmatpush1.msra.mxu0 %v394
    %420 = vmatprep.subr.mxu0 0.0
    %421 = vmatpush1.msra.mxu0 %v395
    %422 = vmatprep.subr.mxu0 0.0
    %423 = vmatpush1.msra.mxu0 %v396
    %424 = vmatprep.subr.mxu0 0.0
    %425 = vmatpush1.msra.mxu0 %v397
    %426 = vmatprep.subr.mxu0 0.0
    %427 = vmatpush1.msra.mxu0 %v398
    %428 = vmatprep.subr.mxu0 0.0
    %429 = vmatpush1.msra.mxu0 0.0
    %430 = vmatprep.subr.mxu0 0.0
    %431 = vmatpush1.msra.mxu0 0.0
    %432 = vmatprep.subr.mxu0 0.0
    %433 = vmatpush1.msra.mxu0 0.0
    %434 = vmatprep.subr.mxu0 0.0
    %435 = vmatpush1.msra.mxu0 0.0
    %436 = vmatprep.subr.mxu0 0.0
    %437 = vmatpush1.msra.mxu0 0.0
    %438 = vmatprep.subr.mxu0 0.0
    %439 = vmatpush1.msra.mxu0 0.0
    %440 = vmatprep.subr.mxu0 0.0
    %441 = vmatpush1.msra.mxu0 0.0
    %442 = vmatprep.subr.mxu0 0.0
    %443 = vmatpush1.msra.mxu0 0.0
    %444 = vmatprep.subr.mxu0 0.0
    %445 = vmatpush1.msra.mxu0 0.0
    %446 = vmatprep.subr.mxu0 0.0
    %447 = vmatpush1.msra.mxu0 0.0
    %448 = vmatprep.subr.mxu0 0.0
    %449 = vmatpush1.msra.mxu0 0.0
    %450 = vmatprep.subr.mxu0 0.0
    %451 = vmatpush1.msra.mxu0 0.0
    %452 = vmatprep.subr.mxu0 0.0
    %453 = vmatpush1.msra.mxu0 0.0
    %454 = vmatprep.subr.mxu0 0.0
    %455 = vmatpush1.msra.mxu0 0.0
    %456 = vmatprep.subr.mxu0 0.0
    %457 = vmatpush1.msra.mxu0 0.0
    %458 = vmatprep.subr.mxu0 0.0
    %459 = vmatpush1.msra.mxu0 0.0
    %460 = vmatprep.subr.mxu0 0.0
    %461 = vmatpush1.msra.mxu0 0.0
    %462 = vmatprep.subr.mxu0 0.0
    %463 = vmatpush1.msra.mxu0 0.0
    %464 = vmatprep.subr.mxu0 0.0
    %465 = vmatpush1.msra.mxu0 0.0
    %466 = vmatprep.subr.mxu0 0.0
    %467 = vmatpush1.msra.mxu0 0.0
    %468 = vmatprep.subr.mxu0 0.0
    %469 = vmatpush1.msra.mxu0 0.0
    %470 = vmatprep.subr.mxu0 0.0
    %471 = vmatpush1.msra.mxu0 0.0
    %472 = vmatprep.subr.mxu0 0.0
    %473 = vmatpush1.msra.mxu0 0.0
    %474 = vmatprep.subr.mxu0 0.0
    %475 = vmatpush1.msra.mxu0 0.0
    %476 = vmatprep.mubr.f32.mxu0 0.0
    %477 = vmatmul.mubr.f32.gmra.mrb[0].mxu0 %v410
    %v478 = vpop.f32.mrb[0].mxu0
    %v479 = vadd.f32 %v406, %v478
    %v480 = vpop.f32.mrb[0].mxu0
    %481 = vdwg.mxu0
    %v482 = vmax.f32 %v479, 0.0
    %v484 = vlaneseq
    %v485 = vshrl.u32 %v484, 7
    %v486 = vsub.s32 0, %v485
    %v487 = vrot.slane %v401, %v486
    %vm489 = vcmask 31744
    %v491 = vsel %vm489, %v482, 0
    %vm493 = vcmask 1043456
    %v495 = vsel %vm493, %v400, 0
    %497 = vmatprep.subr.mxu0 0.0
    %498 = vmatpush1.msra.mxu0 %v495
    %499 = vmatprep.subr.mxu0 0.0
    %500 = vmatpush1.msra.mxu0 0.0
    %501 = vmatprep.subr.mxu0 0.0
    %502 = vmatpush1.msra.mxu0 0.0
    %503 = vmatprep.subr.mxu0 0.0
    %504 = vmatpush1.msra.mxu0 0.0
    %505 = vmatprep.subr.mxu0 0.0
    %506 = vmatpush1.msra.mxu0 0.0
    %507 = vmatprep.subr.mxu0 0.0
    %508 = vmatpush1.msra.mxu0 0.0
    %509 = vmatprep.subr.mxu0 0.0
    %510 = vmatpush1.msra.mxu0 0.0
    %511 = vmatprep.subr.mxu0 0.0
    %512 = vmatpush1.msra.mxu0 0.0
    %513 = vmatprep.subr.mxu0 0.0
    %514 = vmatpush1.msra.mxu0 0.0
    %515 = vmatprep.subr.mxu0 0.0
    %516 = vmatpush1.msra.mxu0 0.0
    %517 = vmatprep.subr.mxu0 0.0
    %518 = vmatpush1.msra.mxu0 0.0
    %519 = vmatprep.subr.mxu0 0.0
    %520 = vmatpush1.msra.mxu0 0.0
    %521 = vmatprep.subr.mxu0 0.0
    %522 = vmatpush1.msra.mxu0 0.0
    %523 = vmatprep.subr.mxu0 0.0
    %524 = vmatpush1.msra.mxu0 0.0
    %525 = vmatprep.subr.mxu0 0.0
    %526 = vmatpush1.msra.mxu0 0.0
    %527 = vmatprep.subr.mxu0 0.0
    %528 = vmatpush1.msra.mxu0 0.0
    %529 = vmatprep.subr.mxu0 0.0
    %530 = vmatpush1.msra.mxu0 0.0
    %531 = vmatprep.subr.mxu0 0.0
    %532 = vmatpush1.msra.mxu0 0.0
    %533 = vmatprep.subr.mxu0 0.0
    %534 = vmatpush1.msra.mxu0 0.0
    %535 = vmatprep.subr.mxu0 0.0
    %536 = vmatpush1.msra.mxu0 0.0
    %537 = vmatprep.subr.mxu0 0.0
    %538 = vmatpush1.msra.mxu0 0.0
    %539 = vmatprep.subr.mxu0 0.0
    %540 = vmatpush1.msra.mxu0 0.0
    %541 = vmatprep.subr.mxu0 0.0
    %542 = vmatpush1.msra.mxu0 0.0
    %543 = vmatprep.subr.mxu0 0.0
    %544 = vmatpush1.msra.mxu0 0.0
    %545 = vmatprep.subr.mxu0 0.0
    %546 = vmatpush1.msra.mxu0 0.0
    %547 = vmatprep.subr.mxu0 0.0
    %548 = vmatpush1.msra.mxu0 0.0
    %549 = vmatprep.subr.mxu0 0.0
    %550 = vmatpush1.msra.mxu0 0.0
    %551 = vmatprep.subr.mxu0 0.0
    %552 = vmatpush1.msra.mxu0 0.0
    %553 = vmatprep.subr.mxu0 0.0
    %554 = vmatpush1.msra.mxu0 0.0
    %555 = vmatprep.subr.mxu0 0.0
    %556 = vmatpush1.msra.mxu0 0.0
    %557 = vmatprep.subr.mxu0 0.0
    %558 = vmatpush1.msra.mxu0 0.0
    %559 = vmatprep.subr.mxu0 0.0
    %560 = vmatpush1.msra.mxu0 0.0
    %561 = vmatprep.mubr.f32.mxu0 0.0
    %562 = vmatmul.mubr.f32.gmra.mrb[0].mxu0 %v491
    %v563 = vpop.f32.mrb[0].mxu0
    %v564 = vadd.f32 %v487, %v563
    %v565 = vpop.f32.mrb[0].mxu0
    %566 = vdwg.mxu0
    %v568 = vrot.slane %v564, 2
    %v570 = vadd.f32 %v564, %v568
    %v571 = vxor.u32 %v570, 2147483648
    %v572 = vmul.f32 %v571, 1.442695
    %v573 = vpow.pop %v572
    %v574 = vadd.f32 %v573, 1.0
    %v575 = vrcp.pop %v574
    %v576 = vmul.f32 1.0, %v575
    %v577 = vlaneseq
    %v578 = vshrl.u32 %v577, 7
    %v579 = vsub.s32 0, %v578
    %v580 = vrot.slane %v576, %v579
    %582 = vbcast.lane.b32.xlu0 %v580, 256
    %v583 = vpop.permute.xlu0 %582
    %s585 = sor.u32 256, 8
    %586 = vbcast.lane.b32.xlu0 %v580, %s585
    %v587 = vpop.permute.xlu0 %586
    %s589 = sor.u32 256, 16
    %590 = vbcast.lane.b32.xlu0 %v580, %s589
    %v591 = vpop.permute.xlu0 %590
    %s593 = sor.u32 256, 24
    %594 = vbcast.lane.b32.xlu0 %v580, %s593
    %v595 = vpop.permute.xlu0 %594
    %s597 = sor.u32 256, 32
    %598 = vbcast.lane.b32.xlu0 %v580, %s597
    %v599 = vpop.permute.xlu0 %598
    %s601 = sor.u32 256, 40
    %602 = vbcast.lane.b32.xlu0 %v580, %s601
    %v603 = vpop.permute.xlu0 %602
    %s605 = sor.u32 256, 48
    %606 = vbcast.lane.b32.xlu0 %v580, %s605
    %v607 = vpop.permute.xlu0 %606
    %s609 = sor.u32 256, 56
    %610 = vbcast.lane.b32.xlu0 %v580, %s609
    %v611 = vpop.permute.xlu0 %610
    %v612 = vlaneseq
    %v613 = vshrl.u32 %v612, 7
    %v614 = vsub.s32 1, %v613
    %v615 = vrot.slane %v576, %v614
    %617 = vbcast.lane.b32.xlu0 %v615, 256
    %v618 = vpop.permute.xlu0 %617
    %s620 = sor.u32 256, 8
    %621 = vbcast.lane.b32.xlu0 %v615, %s620
    %v622 = vpop.permute.xlu0 %621
    %s624 = sor.u32 256, 16
    %625 = vbcast.lane.b32.xlu0 %v615, %s624
    %v626 = vpop.permute.xlu0 %625
    %s628 = sor.u32 256, 24
    %629 = vbcast.lane.b32.xlu0 %v615, %s628
    %v630 = vpop.permute.xlu0 %629
    %s632 = sor.u32 256, 32
    %633 = vbcast.lane.b32.xlu0 %v615, %s632
    %v634 = vpop.permute.xlu0 %633
    %s636 = sor.u32 256, 40
    %637 = vbcast.lane.b32.xlu0 %v615, %s636
    %v638 = vpop.permute.xlu0 %637
    %s640 = sor.u32 256, 48
    %641 = vbcast.lane.b32.xlu0 %v615, %s640
    %v642 = vpop.permute.xlu0 %641
    %s644 = sor.u32 256, 56
    %645 = vbcast.lane.b32.xlu0 %v615, %s644
    %v646 = vpop.permute.xlu0 %645
    %v647 = vmul.f32 %v35, %v583
    %v648 = vmul.f32 %v36, %v583
    %v649 = vmul.f32 %v37, %v587
    %v650 = vmul.f32 %v38, %v587
    %v651 = vmul.f32 %v39, %v591
    %v652 = vmul.f32 %v40, %v591
    %v653 = vmul.f32 %v41, %v595
    %v654 = vmul.f32 %v42, %v595
    %v655 = vmul.f32 %v43, %v599
    %v656 = vmul.f32 %v44, %v599
    %v657 = vmul.f32 %v45, %v603
    %v658 = vmul.f32 %v46, %v603
    %v659 = vmul.f32 %v47, %v607
    %v660 = vmul.f32 %v48, %v607
    %v661 = vmul.f32 %v49, %v611
    %v662 = vmul.f32 %v50, %v611
    %v663 = vmul.f32 %v51, %v618
    %v664 = vmul.f32 %v52, %v618
    %v665 = vmul.f32 %v53, %v622
    %v666 = vmul.f32 %v54, %v622
    %v667 = vmul.f32 %v55, %v626
    %v668 = vmul.f32 %v56, %v626
    %v669 = vmul.f32 %v57, %v630
    %v670 = vmul.f32 %v58, %v630
    %v671 = vmul.f32 %v59, %v634
    %v672 = vmul.f32 %v60, %v634
    %v673 = vmul.f32 %v61, %v638
    %v674 = vmul.f32 %v62, %v638
    %v675 = vmul.f32 %v63, %v642
    %v676 = vmul.f32 %v64, %v642
    %v677 = vmul.f32 %v65, %v646
    %v678 = vmul.f32 %v66, %v646
    %679 = vst [vmem:[#allocation5] sm:$0xff] %v647
    %680 = vst [vmem:[#allocation5 + $0x8] sm:$0xff] %v648
    %681 = vst [vmem:[#allocation5 + $0x10] sm:$0xff] %v649
    %682 = vst [vmem:[#allocation5 + $0x18] sm:$0xff] %v650
    %683 = vst [vmem:[#allocation5 + $0x20] sm:$0xff] %v651
    %684 = vst [vmem:[#allocation5 + $0x28] sm:$0xff] %v652
    %685 = vst [vmem:[#allocation5 + $0x30] sm:$0xff] %v653
    %686 = vst [vmem:[#allocation5 + $0x38] sm:$0xff] %v654
    %687 = vst [vmem:[#allocation5 + $0x40] sm:$0xff] %v655
    %688 = vst [vmem:[#allocation5 + $0x48] sm:$0xff] %v656
    %689 = vst [vmem:[#allocation5 + $0x50] sm:$0xff] %v657
    %690 = vst [vmem:[#allocation5 + $0x58] sm:$0xff] %v658
    %691 = vst [vmem:[#allocation5 + $0x60] sm:$0xff] %v659
    %692 = vst [vmem:[#allocation5 + $0x68] sm:$0xff] %v660
    %693 = vst [vmem:[#allocation5 + $0x70] sm:$0xff] %v661
    %694 = vst [vmem:[#allocation5 + $0x78] sm:$0xff] %v662
    %695 = vst [vmem:[#allocation5 + $0x80] sm:$0xff] %v663
    %696 = vst [vmem:[#allocation5 + $0x88] sm:$0xff] %v664
    %697 = vst [vmem:[#allocation5 + $0x90] sm:$0xff] %v665
    %698 = vst [vmem:[#allocation5 + $0x98] sm:$0xff] %v666
    %699 = vst [vmem:[#allocation5 + $0xa0] sm:$0xff] %v667
    %700 = vst [vmem:[#allocation5 + $0xa8] sm:$0xff] %v668
    %701 = vst [vmem:[#allocation5 + $0xb0] sm:$0xff] %v669
    %702 = vst [vmem:[#allocation5 + $0xb8] sm:$0xff] %v670
    %703 = vst [vmem:[#allocation5 + $0xc0] sm:$0xff] %v671
    %704 = vst [vmem:[#allocation5 + $0xc8] sm:$0xff] %v672
    %705 = vst [vmem:[#allocation5 + $0xd0] sm:$0xff] %v673
    %706 = vst [vmem:[#allocation5 + $0xd8] sm:$0xff] %v674
    %707 = vst [vmem:[#allocation5 + $0xe0] sm:$0xff] %v675
    %708 = vst [vmem:[#allocation5 + $0xe8] sm:$0xff] %v676
    %709 = vst [vmem:[#allocation5 + $0xf0] sm:$0xff] %v677
    %710 = vst [vmem:[#allocation5 + $0xf8] sm:$0xff] %v678
    // Predicated region
    $region26: #{tpu_custom_call.1} parent=1 // pred_check
      _
    $region27: #{tpu_custom_call.1} parent=1 // pred_check_branch
      %712 = sbr.rel (0) target = $region29
    $region28: #{tpu_custom_call.1} parent=1 // pred_region
      %s714 = ssub.s32 4096, 4096
      %715 = vsyncadd [#allocation4], %s714
      %s716 = sshll.u32 [#allocation5], 4
      %s717 = int_to_ptr.vmem [resolvable:$true] %s716
      %722 = dma.vmem_to_hbm [thread:$0]  %s717, 4096, %s5, [#allocation4], 256, 256, 16
    $region29: #{tpu_custom_call.1} parent=1 // pred_fallthru
      _
    // Predicated region
    $region30: #{tpu_custom_call.1} parent=1 // pred_check
      _
    $region31: #{tpu_custom_call.1} parent=1 // pred_check_branch
      %724 = sbr.rel (0) target = $region33
    $region32: #{tpu_custom_call.1} parent=1 // pred_region
      %725 = dma.done [#allocation4], 4096
    $region33: #{tpu_custom_call.1} parent=1 // pred_fallthru
      _
    %726 = vsyncpa [#allocation3], 1
    %727 = vsyncpa [#allocation4], 1

</llo_original>
